<compile_context>
chip_gen: v6e
topology: v6e:2x2x1
jax: 0.10.0
libtpu: 0.0.40
codegen_flags: <defaults>
</compile_context>

<pallas_src>
import jax
import jax.numpy as jnp
from jax.experimental import pallas as pl
from jax.experimental.pallas import tpu as pltpu


def _copy_kernel(x_ref, o_ref):
    # One VMEM tile: straight copy (identity).
    o_ref[...] = x_ref[...]


_LANE_CHOICES = (8192, 4096, 2048, 1024, 512, 256, 128)
# ~4 MiB per block -> double-buffered input + output = ~16 MiB live VMEM,
# comfortably under the 32 MiB default scoped limit on v5e / v6e / v7x.
_TARGET_BLOCK_BYTES = 4 * 1024 * 1024


def _identity_copy_2d(x2d):
    """Streamed identity copy of a 2D (rows, lanes) array with big lane-dense blocks."""
    rows, lanes = x2d.shape
    itemsize = x2d.dtype.itemsize
    # dtype-aware sublane packing: 8 rows/vreg for 32-bit, 16 for bf16, 32 for int8/fp8.
    sublane = 8 * max(1, 4 // itemsize)

    row_bytes = lanes * itemsize
    tile_rows = max(sublane, (_TARGET_BLOCK_BYTES // row_bytes) // sublane * sublane)

    if rows <= tile_rows:
        block = (rows, lanes)        # single whole-array block (full dims)
        grid = (1,)
    else:
        block = (tile_rows, lanes)   # partial edge block (if any) is masked by Pallas
        grid = (pl.cdiv(rows, tile_rows),)

    return pl.pallas_call(
        _copy_kernel,
        out_shape=jax.ShapeDtypeStruct((rows, lanes), x2d.dtype),
        grid_spec=pltpu.PrefetchScalarGridSpec(
            num_scalar_prefetch=0,
            grid=grid,
            in_specs=[pl.BlockSpec(block, lambda i: (i, 0))],
            out_specs=pl.BlockSpec(block, lambda i: (i, 0)),
        ),
        # Identity op: let XLA alias the input buffer with the output so the
        # copy can be elided / done in place instead of 2x HBM traffic.
        input_output_aliases={0: 0},
        compiler_params=pltpu.CompilerParams(
            # Parallel row-grid axis: lets v7x shard steps across its 2 TCs;
            # measured neutral on single-TC v5e/v6e.
            dimension_semantics=("parallel",),
        ),
        cost_estimate=pl.CostEstimate(
            flops=0,
            transcendentals=0,
            bytes_accessed=2 * rows * lanes * itemsize,
        ),
    )(x2d)


@jax.jit
def identity_pallas(x):
    """Identity forward: returns a tensor equal to x (same shape & dtype)."""
    orig_shape = x.shape
    total = x.size
    if total == 0:
        return x

    # Pick the widest lane dim (multiple of 128) that divides the element count,
    # preferring views with >= 8 rows so vregs are sublane-dense as well.
    lanes = None
    for cand in _LANE_CHOICES:
        if total % cand == 0 and total // cand >= 8:
            lanes = cand
            break
    if lanes is None:
        for cand in _LANE_CHOICES:
            if total % cand == 0:
                lanes = cand
                break

    if lanes is not None:
        # Common case (element count divisible by 128): no padding, no slicing --
        # just reshapes around a single streamed copy.
        out2d = _identity_copy_2d(jnp.reshape(x, (total // lanes, lanes)))
        return jnp.reshape(out2d, orig_shape)

    # Awkward sizes: pad the flat view up to a lane-dense 2D shape, copy, slice back.
    lanes = 1024
    rows = pl.cdiv(total, lanes)
    pad = rows * lanes - total
    x_flat = jnp.pad(jnp.reshape(x, (-1,)), (0, pad))
    out2d = _identity_copy_2d(jnp.reshape(x_flat, (rows, lanes)))
    return jnp.reshape(jnp.reshape(out2d, (-1,))[:total], orig_shape)


def ensemble_ir_forward(x, num_iterations=10, key="Affine_mtrx"):
    """Mirror of Build_Ensemble_IRmodel.forward.

    With the external `model` / `Generate_Mi_batch` treated as a black-box
    pass-through, the accumulate-and-divide over `num_iterations` collapses to
    the identity on the prediction tensor.
    """
    # TODO(synk): plug in the real `model` and `Generate_Mi_batch` -- no Pallas
    # equivalent exists for undefined external sub-modules.
    del num_iterations  # mean of N identical detached copies == identity
    return {key: identity_pallas(x)}


if __name__ == "__main__":
    rng = jax.random.PRNGKey(0)
    # Small NCHW-shaped feature/prediction tensor.
    x = jax.random.normal(rng, (2, 4, 16, 16), dtype=jnp.float32)

    out = ensemble_ir_forward(x)
    y = out["Affine_mtrx"]
    jax.block_until_ready(y)

    assert y.shape == x.shape and y.dtype == x.dtype
    assert bool(jnp.all(y == x))
    print("KERNEL_OK")
</pallas_src>

<mosaic_0001>
module attributes {stable_mosaic.version = 11 : i64} {
  func.func @_copy_kernel(%arg0: i32, %arg1: memref<8x256xf32, #tpu.memory_space<vmem>>, %arg2: memref<8x256xf32, #tpu.memory_space<vmem>>) attributes {dimension_semantics = [#tpu.dimension_semantics<parallel>], iteration_bounds = array<i64: 1>, scalar_prefetch = 0 : i64, scratch_operands = 0 : i64, tpu.core_type = #tpu.core_type<tc>, window_params = [{transform_indices = @transform_0, window_bounds = array<i64: 8, 256>}, {transform_indices = @transform_1, window_bounds = array<i64: 8, 256>}]} {
    %c0 = arith.constant 0 : index
    %c0_0 = arith.constant 0 : index
    %0 = vector.load %arg1[%c0, %c0_0] : memref<8x256xf32, #tpu.memory_space<vmem>>, vector<8x256xf32>
    %c0_1 = arith.constant 0 : index
    %c0_2 = arith.constant 0 : index
    %1 = vector.load %arg2[%c0_1, %c0_2] : memref<8x256xf32, #tpu.memory_space<vmem>>, vector<8x256xf32>
    tpu.vector_store %arg2[%c0_1, %c0_2], %0 {strides = array<i32>} : memref<8x256xf32, #tpu.memory_space<vmem>>, vector<8x256xf32>,
    return
  }
  func.func @transform_0(%arg0: i32) -> (i32, i32) {
    %c0_i32 = arith.constant 0 : i32
    %c0_i32_0 = arith.constant 0 : i32
    return %arg0, %c0_i32 : i32, i32
  }
  func.func @transform_1(%arg0: i32) -> (i32, i32) {
    %c0_i32 = arith.constant 0 : i32
    %c0_i32_0 = arith.constant 0 : i32
    return %arg0, %c0_i32 : i32, i32
  }
}

</mosaic_0001>

<llo_original>
// kernel: identity_pallas.1
$region0: #{identity_pallas.1}
  #allocation0 [shape = 'u32[]', space=smem, size = 0x4, offset = 0x4, fixed_abs, tag = 'smem constant byte address 0x4 - core index']
  #allocation1 [shape = 'u32[144,128]{1,0:T(1,128)}', space=vmem, size = 0x12000, scoped, tag = 'internal scratch']
  %s0 = inlined_call_operand.vmem [shape: f32[8,256], index: 0, kind: input, shape index: {}, may-alias: {0,1}]
  %s1 = inlined_call_operand.vmem [shape: f32[8,256], index: 1, kind: output, shape index: {}, may-alias: {0,1}]
  %s2 = sld [smem:[#allocation0]]
  $region14: #{identity_pallas.1} parent=0
    _
  %s4 = ssub.s32 1, %s2
  %s5 = scalar_select 0, %s4, %s2
  // Predicated region
  $region2: #{identity_pallas.1} parent=0 // pred_check
    _
  $region3: #{identity_pallas.1} parent=0 // pred_check_branch
    %7 = sbr.rel (0) target = $region5
  $region4: #{identity_pallas.1} parent=0 // pred_region
    _
  $region5: #{identity_pallas.1} parent=0 // pred_fallthru
    _
  %v8 = vld [vmem:[%s0] sm:$0xff]
  %v9 = vld [vmem:[%s0 + $0x8] sm:$0xff]
  %10 = vst [vmem:[%s1] sm:$0xff] %v8
  %11 = vst [vmem:[%s1 + $0x8] sm:$0xff] %v9
  // Predicated region
  $region6: #{identity_pallas.1} parent=0 // pred_check
    _
  $region7: #{identity_pallas.1} parent=0 // pred_check_branch
    %13 = sbr.rel (0) target = $region9
  $region8: #{identity_pallas.1} parent=0 // pred_region
    _
  $region9: #{identity_pallas.1} parent=0 // pred_fallthru
    _
  // Predicated region
  $region10: #{identity_pallas.1} parent=0 // pred_check
    _
  $region11: #{identity_pallas.1} parent=0 // pred_check_branch
    %15 = sbr.rel (0) target = $region13
  $region12: #{identity_pallas.1} parent=0 // pred_region
    _
  $region13: #{identity_pallas.1} parent=0 // pred_fallthru
    _

</llo_original>
